<compile_context>
chip_gen: v7x
topology: tpu7x:2x2x1
jax: 0.10.0
libtpu: 0.0.40
codegen_flags: <defaults>
</compile_context>

<pallas_src>
import jax
import jax.numpy as jnp
from jax import lax
from jax.experimental import pallas as pl
from jax.experimental.pallas import tpu as pltpu


def _round_up(a, m):
    return (a + m - 1) // m * m


# ---------------- fused relu(X @ W + bias) kernel (conv hot path) ------------------
def _fused_mm_kernel(x_ref, w_ref, b_ref, o_ref):
    acc = jnp.dot(x_ref[...], w_ref[...], preferred_element_type=jnp.float32)
    o_ref[...] = jnp.maximum(acc + b_ref[...], 0.0).astype(o_ref.dtype)


def fused_matmul_bias_relu(x, w, bias2d, tm, out_dtype, vmem_limit_bytes=None):
    # x: (M, K) bf16, w: (K, N) bf16, bias2d: (1, N) f32.  M % tm == 0, K % 128 == 0.
    M, K = x.shape
    N = w.shape[1]

    cp_kwargs = dict(dimension_semantics=("parallel",))
    if vmem_limit_bytes is not None:
        cp_kwargs["vmem_limit_bytes"] = vmem_limit_bytes

    def build(resident_kwargs):
        return pl.pallas_call(
            _fused_mm_kernel,
            out_shape=jax.ShapeDtypeStruct((M, N), out_dtype),
            grid=(M // tm,),
            in_specs=[
                pl.BlockSpec((tm, K), lambda i: (i, 0)),                    # patch tiles stream over M
                pl.BlockSpec((K, N), lambda i: (0, 0), **resident_kwargs),  # weights resident
                pl.BlockSpec((1, N), lambda i: (0, 0), **resident_kwargs),  # bias resident
            ],
            out_specs=pl.BlockSpec((tm, N), lambda i: (i, 0)),
            compiler_params=pltpu.CompilerParams(**cp_kwargs),
        )(x, w, bias2d)

    try:
        # constant-index weights/bias: single buffer -> saves VMEM (v7x 64 MiB)
        return build(dict(pipeline_mode=pl.Buffered(1)))
    except Exception:
        # TODO(synk): pipeline_mode=pl.Buffered(1) unsupported on this jax build.
        return build({})


def im2col(x, k=5, stride=2, pad=2):
    # x: (N, H, W, C) -> patches (N*OH*OW, k*k*C); row index order (ki*k+kj)*C + c
    N, H, W, C = x.shape
    xp = jnp.pad(x, ((0, 0), (pad, pad), (pad, pad), (0, 0)))
    OH = (H + 2 * pad - k) // stride + 1
    OW = (W + 2 * pad - k) // stride + 1
    cols = []
    for ki in range(k):
        for kj in range(k):
            cols.append(xp[:, ki:ki + stride * OH:stride, kj:kj + stride * OW:stride, :])
    patches = jnp.stack(cols, axis=3)  # (N, OH, OW, k*k, C)
    return patches.reshape(N * OH * OW, k * k * C), OH, OW


def conv_layer(x_nhwc, w_mat_p, bias2d, out_dtype, *, tm_max=512, vmem_limit_bytes=None):
    # w_mat_p: (Kp, Cout) bf16, BN scale folded, Kp multiple of 128; bias2d: (1, Cout) f32
    N = x_nhwc.shape[0]
    # build patches directly in bf16 so the materialized (M, Kp) array is bf16
    patches, OH, OW = im2col(x_nhwc.astype(jnp.bfloat16))
    M, K = patches.shape
    Kp = w_mat_p.shape[0]
    if Kp != K:
        patches = jnp.pad(patches, ((0, 0), (0, Kp - K)))

    # bf16-native sublane packing is 16 rows.  Aim for >=4 grid steps when rows
    # allow (>=2 engages v7x's second TensorCore and overlaps patch DMA).
    Mp = _round_up(M, 16)
    if Mp <= 16:
        tm = Mp
    else:
        tm = min(tm_max, max(16, _round_up(pl.cdiv(Mp, 4), 16)))
    Mp = _round_up(Mp, tm)
    if Mp != M:
        patches = jnp.pad(patches, ((0, Mp - M), (0, 0)))

    out = fused_matmul_bias_relu(patches, w_mat_p, bias2d, tm, out_dtype,
                                 vmem_limit_bytes)
    return out[:M].reshape(N, OH, OW, -1)


def conv_block_forward(x_nchw, pp):
    x = jnp.transpose(x_nchw, (0, 2, 3, 1))  # NCHW -> NHWC
    # conv1..conv3: bf16 activation outputs (halve HBM writeback + next layer's
    # 25x-amplified im2col read).  conv4: f32 (feeds spatial mean).
    x = conv_layer(x, pp["w1p"], pp["b1p"], jnp.bfloat16)
    x = conv_layer(x, pp["w2p"], pp["b2p"], jnp.bfloat16)   # bn2 folded in prep
    x = conv_layer(x, pp["w3p"], pp["b3p"], jnp.bfloat16)
    x = conv_layer(x, pp["w4p"], pp["b4p"], jnp.float32)    # bn4 folded in prep
    # TODO(synk): spatial mean stays JAX glue; could be fused into conv4's epilogue.
    return x.mean(axis=(1, 2))  # (N, 256) f32


# ---------------- CfC recurrence kernel (grid over batch, fori_loop over T) --------
def _cfc_kernel(xz_ref, h0_ref, wbh_ref, wff1_ref, wff2_ref, wt_ref,
                bff1_ref, bff2_ref, bt_ref, hall_ref, hx_ref):
    # Per-grid-step (one batch element) blocks:
    #   xz_ref  : (1, T, 1, 128)  precomputed x_t @ wbx + bb
    #   h0_ref  : (1, 1, Hn)
    #   wbh_ref : (Hn, 128)   recurrent backbone weights (resident)
    #   wff1/wff2/wt : (128, Hn), biases (1, Hn)   [wt = wta+wtb, ts == 1.0]
    #   hall_ref: (1, T, 1, Hn), hx_ref: (1, 1, Hn)
    T = xz_ref.shape[1]

    def step(t, h):
        # backbone Linear(D+H, 128): hoisted x-part + recurrent part, lecun_tanh
        z = xz_ref[0, t] + jnp.dot(h, wbh_ref[...], preferred_element_type=jnp.float32)
        z = 1.7159 * jnp.tanh(0.666 * z)
        # three separate 64-wide head dots: no non-128-aligned lane slices
        ff1 = jnp.tanh(jnp.dot(z, wff1_ref[...], preferred_element_type=jnp.float32)
                       + bff1_ref[...])
        ff2 = jnp.tanh(jnp.dot(z, wff2_ref[...], preferred_element_type=jnp.float32)
                       + bff2_ref[...])
        t_interp = jax.nn.sigmoid(jnp.dot(z, wt_ref[...], preferred_element_type=jnp.float32)
                                  + bt_ref[...])
        h_new = ff1 * (1.0 - t_interp) + t_interp * ff2
        hall_ref[0, t] = h_new
        return h_new

    h_final = lax.fori_loop(0, T, step, h0_ref[0], unroll=(T <= 32))
    hx_ref[0] = h_final.astype(hx_ref.dtype)


def cfc_forward(x_seq, pp, hx=None):
    B, T, D = x_seq.shape
    Hn = pp["wbh"].shape[0]
    A = pp["wfc"].shape[1]
    if hx is None:
        hx = jnp.zeros((B, Hn), jnp.float32)

    # hoisted input projection for all timesteps: one large matmul in the wrapper
    xz = x_seq.reshape(B * T, D).astype(jnp.float32) @ pp["wbx"] + pp["bb"]
    xz = xz.reshape(B, T, 1, -1)                      # (B, T, 1, 128)
    h0 = hx.astype(jnp.float32).reshape(B, 1, Hn)

    h_all, hx_out = pl.pallas_call(
        _cfc_kernel,
        out_shape=(jax.ShapeDtypeStruct((B, T, 1, Hn), jnp.float32),
                   jax.ShapeDtypeStruct((B, 1, Hn), jnp.float32)),
        grid=(B,),
        in_specs=[
            pl.BlockSpec((1, T, 1, xz.shape[-1]), lambda b: (b, 0, 0, 0)),
            pl.BlockSpec((1, 1, Hn), lambda b: (b, 0, 0)),
            pl.BlockSpec(pp["wbh"].shape, lambda b: (0, 0)),
            pl.BlockSpec(pp["wff1"].shape, lambda b: (0, 0)),
            pl.BlockSpec(pp["wff2"].shape, lambda b: (0, 0)),
            pl.BlockSpec(pp["wt"].shape, lambda b: (0, 0)),
            pl.BlockSpec(pp["bff1"].shape, lambda b: (0, 0)),
            pl.BlockSpec(pp["bff2"].shape, lambda b: (0, 0)),
            pl.BlockSpec(pp["bt"].shape, lambda b: (0, 0)),
        ],
        out_specs=(
            pl.BlockSpec((1, T, 1, Hn), lambda b: (b, 0, 0, 0)),
            pl.BlockSpec((1, 1, Hn), lambda b: (b, 0, 0)),
        ),
        # batch elements are independent -> shards across v7x's two TensorCores
        # (on single-TC chips this serializes over B; negligible at small B)
        compiler_params=pltpu.CompilerParams(dimension_semantics=("parallel",)),
    )(xz, h0, pp["wbh"], pp["wff1"], pp["wff2"], pp["wt"],
      pp["bff1"], pp["bff2"], pp["bt"])

    # hoisted output projection: one (B*T, Hn) @ (Hn, A) matmul
    out = (h_all.reshape(B * T, Hn) @ pp["wfc"] + pp["bfc"]).reshape(B, T, A)
    return out, hx_out.reshape(B, Hn)


def conv_cfc_forward(x, pp, hx=None):
    # x: (batch, seq, C, H, W) — matches PyTorch ConvCfC input convention
    B, T = x.shape[0], x.shape[1]
    x_flat = x.reshape((B * T,) + x.shape[2:])
    feat = conv_block_forward(x_flat, pp)          # (B*T, 256)
    feat = feat.reshape(B, T, feat.shape[-1])
    return cfc_forward(feat, pp, hx)


# ---------------- one-time weight preparation (fold BN, pad K, cast, fuse heads) ---
def prepare_params(p):
    eps = 1e-5

    def fold(w, b, gamma=None, beta=None, mean=None, var=None):
        if gamma is not None:  # eval-mode BN folded: scale into W, shift into bias
            s = gamma / jnp.sqrt(var + eps)
            w = w * s[None, :]
            b = beta + (b - mean) * s
        K = w.shape[0]
        Kp = _round_up(K, 128)
        if Kp != K:
            w = jnp.pad(w, ((0, Kp - K), (0, 0)))
        return w.astype(jnp.bfloat16), b.reshape(1, -1).astype(jnp.float32)

    pp = {}
    pp["w1p"], pp["b1p"] = fold(p["w1"], p["b1"])
    pp["w2p"], pp["b2p"] = fold(p["w2"], p["b2"], p["bn2_gamma"], p["bn2_beta"],
                                p["bn2_mean"], p["bn2_var"])
    pp["w3p"], pp["b3p"] = fold(p["w3"], p["b3"])
    pp["w4p"], pp["b4p"] = fold(p["w4"], p["b4"], p["bn4_gamma"], p["bn4_beta"],
                                p["bn4_mean"], p["bn4_var"])

    # CfC: ts == 1.0 (default mode) -> sigmoid(ta*1 + tb) == sigmoid(z@(wta+wtb)+(bta+btb))
    pp["wbx"] = p["wbx"].astype(jnp.float32)
    pp["bb"] = p["bb"].astype(jnp.float32)
    pp["wbh"] = p["wbh"].astype(jnp.float32)
    pp["wff1"] = p["wff1"].astype(jnp.float32)
    pp["bff1"] = p["bff1"].reshape(1, -1).astype(jnp.float32)
    pp["wff2"] = p["wff2"].astype(jnp.float32)
    pp["bff2"] = p["bff2"].reshape(1, -1).astype(jnp.float32)
    pp["wt"] = (p["wta"] + p["wtb"]).astype(jnp.float32)
    pp["bt"] = (p["bta"] + p["btb"]).reshape(1, -1).astype(jnp.float32)
    pp["wfc"] = p["wfc"].astype(jnp.float32)
    pp["bfc"] = p["bfc"].astype(jnp.float32)
    return pp


# ---------------- deterministic parameter init ------------------------------------
def init_params(key, n_actions=8):
    ks = jax.random.split(key, 40)

    def lin(k, fan_in, shape):
        return jax.random.normal(k, shape, jnp.float32) / jnp.sqrt(float(fan_in))

    p = {}
    # ConvBlock (weights stored as (KH*KW*Cin, Cout) matching im2col row order)
    p["w1"] = lin(ks[0], 5 * 5 * 4, (5 * 5 * 4, 64))
    p["b1"] = 0.01 * jax.random.normal(ks[1], (64,), jnp.float32)
    p["w2"] = lin(ks[2], 5 * 5 * 64, (5 * 5 * 64, 128))
    p["b2"] = 0.01 * jax.random.normal(ks[3], (128,), jnp.float32)
    p["bn2_gamma"] = 1.0 + 0.1 * jax.random.normal(ks[4], (128,), jnp.float32)
    p["bn2_beta"] = 0.1 * jax.random.normal(ks[5], (128,), jnp.float32)
    p["bn2_mean"] = 0.1 * jax.random.normal(ks[6], (128,), jnp.float32)
    p["bn2_var"] = jnp.abs(1.0 + 0.1 * jax.random.normal(ks[7], (128,), jnp.float32))
    p["w3"] = lin(ks[8], 5 * 5 * 128, (5 * 5 * 128, 128))
    p["b3"] = 0.01 * jax.random.normal(ks[9], (128,), jnp.float32)
    p["w4"] = lin(ks[10], 5 * 5 * 128, (5 * 5 * 128, 256))
    p["b4"] = 0.01 * jax.random.normal(ks[11], (256,), jnp.float32)
    p["bn4_gamma"] = 1.0 + 0.1 * jax.random.normal(ks[12], (256,), jnp.float32)
    p["bn4_beta"] = 0.1 * jax.random.normal(ks[13], (256,), jnp.float32)
    p["bn4_mean"] = 0.1 * jax.random.normal(ks[14], (256,), jnp.float32)
    p["bn4_var"] = jnp.abs(1.0 + 0.1 * jax.random.normal(ks[15], (256,), jnp.float32))

    # CfC(256, 64, proj_size=n_actions): backbone Linear(320,128) + 4 heads + proj fc
    p["wbx"] = lin(ks[16], 320, (256, 128))
    p["wbh"] = lin(ks[17], 320, (64, 128))
    p["bb"] = jnp.zeros((128,), jnp.float32)
    p["wff1"] = lin(ks[18], 128, (128, 64)); p["bff1"] = jnp.zeros((64,), jnp.float32)
    p["wff2"] = lin(ks[19], 128, (128, 64)); p["bff2"] = jnp.zeros((64,), jnp.float32)
    p["wta"] = lin(ks[20], 128, (128, 64)); p["bta"] = jnp.zeros((64,), jnp.float32)
    p["wtb"] = lin(ks[21], 128, (128, 64)); p["btb"] = jnp.zeros((64,), jnp.float32)
    p["wfc"] = lin(ks[22], 64, (64, n_actions))
    p["bfc"] = jnp.zeros((n_actions,), jnp.float32)
    return p


if __name__ == "__main__":
    key = jax.random.PRNGKey(0)
    kp, kx = jax.random.split(key)
    B, T, C, H, W = 2, 4, 4, 16, 16
    n_actions = 8

    params = init_params(kp, n_actions=n_actions)
    prepped = prepare_params(params)      # one-time: BN fold, K pad, bf16 cast, head fuse
    x = jax.random.normal(kx, (B, T, C, H, W), jnp.float32)

    out, hx = conv_cfc_forward(x, prepped)
    out, hx = jax.block_until_ready((out, hx))

    assert out.shape == (B, T, n_actions), out.shape
    assert hx.shape == (B, 64), hx.shape
    assert jnp.all(jnp.isfinite(out)) and jnp.all(jnp.isfinite(hx))
    print("KERNEL_OK")
</pallas_src>

<mosaic_0001>
module attributes {stable_mosaic.version = 11 : i64} {
  func.func @_fused_mm_kernel(%arg0: i32, %arg1: memref<128x128xbf16, #tpu.memory_space<vmem>>, %arg2: memref<128x64xbf16, #tpu.memory_space<vmem>>, %arg3: memref<1x64xf32, #tpu.memory_space<vmem>>, %arg4: memref<128x64xbf16, #tpu.memory_space<vmem>>) attributes {dimension_semantics = [#tpu.dimension_semantics<parallel>], iteration_bounds = array<i64: 4>, scalar_prefetch = 0 : i64, scratch_operands = 0 : i64, tpu.core_type = #tpu.core_type<tc>, window_params = [{transform_indices = @transform_0, window_bounds = array<i64: 128, 128>}, {pipeline_mode = #tpu.pipeline_mode<synchronous>, transform_indices = @transform_1, window_bounds = array<i64: 128, 64>}, {pipeline_mode = #tpu.pipeline_mode<synchronous>, transform_indices = @transform_2, window_bounds = array<i64: 1, 64>}, {transform_indices = @transform_3, window_bounds = array<i64: 128, 64>}]} {
    %c0 = arith.constant 0 : index
    %c0_0 = arith.constant 0 : index
    %0 = vector.load %arg1[%c0, %c0_0] : memref<128x128xbf16, #tpu.memory_space<vmem>>, vector<128x128xbf16>
    %c0_1 = arith.constant 0 : index
    %c0_2 = arith.constant 0 : index
    %1 = vector.load %arg2[%c0_1, %c0_2] : memref<128x64xbf16, #tpu.memory_space<vmem>>, vector<128x64xbf16>
    %cst = arith.constant dense<0.000000e+00> : vector<128x64xf32>
    %2 = tpu.matmul %0, %1, %cst {dimension_numbers = #tpu.dot_dimension_numbers<[1], [0], [0], [1], [0, 0, 1, 1], [], []>} : vector<128x128xbf16>, vector<128x64xbf16>, vector<128x64xf32> -> vector<128x64xf32>
    %c0_3 = arith.constant 0 : index
    %c0_4 = arith.constant 0 : index
    %3 = vector.load %arg3[%c0_3, %c0_4] : memref<1x64xf32, #tpu.memory_space<vmem>>, vector<1x64xf32>
    %4 = vector.broadcast %3 : vector<1x64xf32> to vector<128x64xf32>
    %5 = arith.addf %2, %4 : vector<128x64xf32>
    %cst_5 = arith.constant 0.000000e+00 : f32
    %6 = vector.broadcast %cst_5 : f32 to vector<128x64xf32>
    %7 = arith.maximumf %5, %6 : vector<128x64xf32>
    %8 = arith.truncf %7 : vector<128x64xf32> to vector<128x64xbf16>
    %c0_6 = arith.constant 0 : index
    %c0_7 = arith.constant 0 : index
    %9 = vector.load %arg4[%c0_6, %c0_7] : memref<128x64xbf16, #tpu.memory_space<vmem>>, vector<128x64xbf16>
    tpu.vector_store %arg4[%c0_6, %c0_7], %8 {strides = array<i32>} : memref<128x64xbf16, #tpu.memory_space<vmem>>, vector<128x64xbf16>,
    return
  }
  func.func @transform_0(%arg0: i32) -> (i32, i32) {
    %c0_i32 = arith.constant 0 : i32
    %c0_i32_0 = arith.constant 0 : i32
    return %arg0, %c0_i32 : i32, i32
  }
  func.func @transform_1(%arg0: i32) -> (i32, i32) {
    %c0_i32 = arith.constant 0 : i32
    %c0_i32_0 = arith.constant 0 : i32
    %c0_i32_1 = arith.constant 0 : i32
    return %c0_i32, %c0_i32_0 : i32, i32
  }
  func.func @transform_2(%arg0: i32) -> (i32, i32) {
    %c0_i32 = arith.constant 0 : i32
    %c0_i32_0 = arith.constant 0 : i32
    %c0_i32_1 = arith.constant 0 : i32
    return %c0_i32, %c0_i32_0 : i32, i32
  }
  func.func @transform_3(%arg0: i32) -> (i32, i32) {
    %c0_i32 = arith.constant 0 : i32
    %c0_i32_0 = arith.constant 0 : i32
    return %arg0, %c0_i32 : i32, i32
  }
}

module attributes {stable_mosaic.version = 11 : i64} {
  func.func @_fused_mm_kernel(%arg0: i32, %arg1: memref<128x128xbf16, #tpu.memory_space<vmem>>, %arg2: memref<128x64xbf16, #tpu.memory_space<vmem>>, %arg3: memref<1x64xf32, #tpu.memory_space<vmem>>, %arg4: memref<128x64xbf16, #tpu.memory_space<vmem>>) attributes {dimension_semantics = [#tpu.dimension_semantics<parallel>], iteration_bounds = array<i64: 4>, scalar_prefetch = 0 : i64, scratch_operands = 0 : i64, tpu.core_type = #tpu.core_type<tc>, window_params = [{transform_indices = @transform_0, window_bounds = array<i64: 128, 128>}, {pipeline_mode = #tpu.pipeline_mode<synchronous>, transform_indices = @transform_1, window_bounds = array<i64: 128, 64>}, {pipeline_mode = #tpu.pipeline_mode<synchronous>, transform_indices = @transform_2, window_bounds = array<i64: 1, 64>}, {transform_indices = @transform_3, window_bounds = array<i64: 128, 64>}]} {
    %c0 = arith.constant 0 : index
    %c0_0 = arith.constant 0 : index
    %0 = vector.load %arg1[%c0, %c0_0] : memref<128x128xbf16, #tpu.memory_space<vmem>>, vector<128x128xbf16>
    %c0_1 = arith.constant 0 : index
    %c0_2 = arith.constant 0 : index
    %1 = vector.load %arg2[%c0_1, %c0_2] : memref<128x64xbf16, #tpu.memory_space<vmem>>, vector<128x64xbf16>
    %cst = arith.constant dense<0.000000e+00> : vector<128x64xf32>
    %2 = tpu.matmul %0, %1, %cst {dimension_numbers = #tpu.dot_dimension_numbers<[1], [0], [0], [1], [0, 0, 1, 1], [], []>} : vector<128x128xbf16>, vector<128x64xbf16>, vector<128x64xf32> -> vector<128x64xf32>
    %c0_3 = arith.constant 0 : index
    %c0_4 = arith.constant 0 : index
    %3 = vector.load %arg3[%c0_3, %c0_4] : memref<1x64xf32, #tpu.memory_space<vmem>>, vector<1x64xf32>
    %4 = vector.broadcast %3 : vector<1x64xf32> to vector<128x64xf32>
    %5 = arith.addf %2, %4 : vector<128x64xf32>
    %cst_5 = arith.constant 0.000000e+00 : f32
    %6 = vector.broadcast %cst_5 : f32 to vector<128x64xf32>
    %7 = arith.maximumf %5, %6 : vector<128x64xf32>
    %8 = arith.truncf %7 : vector<128x64xf32> to vector<128x64xbf16>
    %c0_6 = arith.constant 0 : index
    %c0_7 = arith.constant 0 : index
    %9 = vector.load %arg4[%c0_6, %c0_7] : memref<128x64xbf16, #tpu.memory_space<vmem>>, vector<128x64xbf16>
    tpu.vector_store %arg4[%c0_6, %c0_7], %8 {strides = array<i32>} : memref<128x64xbf16, #tpu.memory_space<vmem>>, vector<128x64xbf16>,
    return
  }
  func.func @transform_0(%arg0: i32) -> (i32, i32) {
    %c0_i32 = arith.constant 0 : i32
    %c0_i32_0 = arith.constant 0 : i32
    return %arg0, %c0_i32 : i32, i32
  }
  func.func @transform_1(%arg0: i32) -> (i32, i32) {
    %c0_i32 = arith.constant 0 : i32
    %c0_i32_0 = arith.constant 0 : i32
    %c0_i32_1 = arith.constant 0 : i32
    return %c0_i32, %c0_i32_0 : i32, i32
  }
  func.func @transform_2(%arg0: i32) -> (i32, i32) {
    %c0_i32 = arith.constant 0 : i32
    %c0_i32_0 = arith.constant 0 : i32
    %c0_i32_1 = arith.constant 0 : i32
    return %c0_i32, %c0_i32_0 : i32, i32
  }
  func.func @transform_3(%arg0: i32) -> (i32, i32) {
    %c0_i32 = arith.constant 0 : i32
    %c0_i32_0 = arith.constant 0 : i32
    return %arg0, %c0_i32 : i32, i32
  }
}

</mosaic_0001>

<llo_original>
// kernel: tpu_custom_call.1
$region0: #{tpu_custom_call.1}
  #allocation0 [shape = 'u32[]', space=smem, size = 0x4, offset = 0x4, fixed_abs, tag = 'smem constant byte address 0x4 - core index']
  #allocation1 [shape = 'u32[144,128]{1,0:T(1,128)}', space=vmem, size = 0x12000, scoped, tag = 'internal scratch']
  %s0 = inlined_call_operand.hbm [shape: bf16[512,128], index: 0, kind: input, shape index: {}]
  %s1 = inlined_call_operand.vmem [shape: bf16[128,64], index: 1, kind: input, shape index: {}]
  %s2 = inlined_call_operand.vmem [shape: f32[1,64], index: 2, kind: input, shape index: {}]
  %s3 = inlined_call_operand.vmem [shape: bf16[512,64], index: 3, kind: output, shape index: {}]
  %s4 = sld [smem:[#allocation0]]
  $region49: #{tpu_custom_call.1} parent=0
    _
  %s6 = ssub.s32 1, %s4
  %s7 = scalar_select 0, %s6, %s4
  $region1: #{tpu_custom_call.1} parent=0
    #allocation2 [shape = 'u8[65536]{0}', space=vmem, size = 0x10000, scoped, tag = 'input window, operand 0']
    #allocation3 [shape = 's32[2]{0}', space=sflag, size = 0x8, scoped, tag = 'scoped memory for tpu_custom_call.1']
    %8 = vsyncpa [#allocation3], 0
    %s9 = scalar_lea.sflag [#allocation3], 1
    %10 = vsyncpa %s9, 0
    loop: start=0, step=1, limit=6
    $region2: #{tpu_custom_call.1} parent=1 // loop_pre_header
      _
    $region3: #{tpu_custom_call.1} parent=1 // loop_header
      %s12 = sphi 0, %s16
      %p13 = scmp.ge.s32.totalorder %s12, 6
      %s22 = sphi 0, %s24
      %s25 = sphi 0, %s22
      %s26 = sphi 0, %s25
      %s42 = sphi 0, %s26
      %s46 = sphi 0, %s46
      %s48 = sphi 0, %s46
      %s49 = sphi 0, %s48
      %s63 = sphi 0, %s49
      %s67 = sphi 0, %s67
      %s69 = sphi 0, %s67
      %s70 = sphi 0, %s69
      %s84 = sphi 0, %s70
      %s90 = sphi 0, %s92
      %s93 = sphi 0, %s90
      %s94 = sphi 0, %s93
      %s110 = sphi 0, %s94
    $region4: #{tpu_custom_call.1} parent=1 // loop_header_branch
      %15 = sbr.rel (%p13) target = $region8
    $region5: #{tpu_custom_call.1} parent=1 // loop_body
      %s17 = ssub.s32 %s12, 1
      %s18 = ssub.s32 %s12, 2
      %s19 = sadd.s32 %s12, 1
      %s20 = ssub.s32 %s12, %s19
      %p21 = scmp.eq.s32.totalorder %s20, 0
      %s23 = sadd.s32 %s22, 1
      %s24 = scalar_select %p21, %s22, %s23
      %p27 = pneg %p21
      %p28 = scmp.eq.s32.totalorder %s12, 3
      %p29 = por %p27, %p28
      %p30 = scmp.ne.s32.totalorder %s22, %s25
      %p31 = scmp.eq.s32.totalorder %s12, 0
      %p32 = por %p30, %p31
      %p33 = scmp.ne.s32.totalorder %s22, %s25
      %p34 = scmp.eq.s32.totalorder %s17, 3
      %p35 = por %p33, %p34
      %p36 = scmp.ne.s32.totalorder %s25, %s26
      %p37 = scmp.eq.s32.totalorder %s17, 0
      %p38 = por %p36, %p37
      %p39 = scmp.ne.s32.totalorder %s25, %s26
      %p40 = scmp.eq.s32.totalorder %s18, 3
      %p41 = por %p39, %p40
      %p43 = scmp.ne.s32.totalorder %s26, %s42
      %p44 = scmp.eq.s32.totalorder %s18, 0
      %p45 = por %p43, %p44
      %s47 = sadd.s32 %s46, 1
      %p50 = scmp.eq.s32.totalorder %s12, 3
      %p51 = scmp.ne.s32.totalorder %s46, %s48
      %p52 = scmp.eq.s32.totalorder %s12, 0
      %p53 = por %p51, %p52
      %p54 = scmp.ne.s32.totalorder %s46, %s48
      %p55 = scmp.eq.s32.totalorder %s17, 3
      %p56 = por %p54, %p55
      %p57 = scmp.ne.s32.totalorder %s48, %s49
      %p58 = scmp.eq.s32.totalorder %s17, 0
      %p59 = por %p57, %p58
      %p60 = scmp.ne.s32.totalorder %s48, %s49
      %p61 = scmp.eq.s32.totalorder %s18, 3
      %p62 = por %p60, %p61
      %p64 = scmp.ne.s32.totalorder %s49, %s63
      %p65 = scmp.eq.s32.totalorder %s18, 0
      %p66 = por %p64, %p65
      %s68 = sadd.s32 %s67, 1
      %p71 = scmp.eq.s32.totalorder %s12, 3
      %p72 = scmp.ne.s32.totalorder %s67, %s69
      %p73 = scmp.eq.s32.totalorder %s12, 0
      %p74 = por %p72, %p73
      %p75 = scmp.ne.s32.totalorder %s67, %s69
      %p76 = scmp.eq.s32.totalorder %s17, 3
      %p77 = por %p75, %p76
      %p78 = scmp.ne.s32.totalorder %s69, %s70
      %p79 = scmp.eq.s32.totalorder %s17, 0
      %p80 = por %p78, %p79
      %p81 = scmp.ne.s32.totalorder %s69, %s70
      %p82 = scmp.eq.s32.totalorder %s18, 3
      %p83 = por %p81, %p82
      %p85 = scmp.ne.s32.totalorder %s70, %s84
      %p86 = scmp.eq.s32.totalorder %s18, 0
      %p87 = por %p85, %p86
      %s88 = ssub.s32 %s12, %s19
      %p89 = scmp.eq.s32.totalorder %s88, 0
      %s91 = sadd.s32 %s90, 1
      %s92 = scalar_select %p89, %s90, %s91
      %p95 = pneg %p89
      %p96 = scmp.eq.s32.totalorder %s12, 3
      %p97 = por %p95, %p96
      %p98 = scmp.ne.s32.totalorder %s90, %s93
      %p99 = scmp.eq.s32.totalorder %s12, 0
      %p100 = por %p98, %p99
      %p101 = scmp.ne.s32.totalorder %s90, %s93
      %p102 = scmp.eq.s32.totalorder %s17, 3
      %p103 = por %p101, %p102
      %p104 = scmp.ne.s32.totalorder %s93, %s94
      %p105 = scmp.eq.s32.totalorder %s17, 0
      %p106 = por %p104, %p105
      %p107 = scmp.ne.s32.totalorder %s93, %s94
      %p108 = scmp.eq.s32.totalorder %s18, 3
      %p109 = por %p107, %p108
      %p111 = scmp.ne.s32.totalorder %s94, %s110
      %p112 = scmp.eq.s32.totalorder %s18, 0
      %p113 = por %p111, %p112
      %p114 = scmp.le.s32.totalorder 1, %s12
      %p115 = scmp.lt.s32.totalorder %s12, 5
      %p116 = pnand %p114, %p115
      %p117 = pneg %p116
      // Predicated region
      $region9: #{tpu_custom_call.1} parent=5 // pred_check
        _
      $region10: #{tpu_custom_call.1} parent=5 // pred_check_branch
        %119 = sbr.rel (%p116) target = $region12
      $region11: #{tpu_custom_call.1} parent=5 // pred_region
        %s120 = ssub.s32 %s12, 1
        // Predicated region
        $region13: #{tpu_custom_call.1} parent=11 // pred_check
          %p121 = pneg %p59
        $region14: #{tpu_custom_call.1} parent=11 // pred_check_branch
          %123 = sbr.rel (%p121) target = $region16
        $region15: #{tpu_custom_call.1} parent=11 // pred_region
          _
        $region16: #{tpu_custom_call.1} parent=11 // pred_fallthru
          _
        // Predicated region
        $region17: #{tpu_custom_call.1} parent=11 // pred_check
          %p124 = pneg %p80
        $region18: #{tpu_custom_call.1} parent=11 // pred_check_branch
          %126 = sbr.rel (%p124) target = $region20
        $region19: #{tpu_custom_call.1} parent=11 // pred_region
          _
        $region20: #{tpu_custom_call.1} parent=11 // pred_fallthru
          _
      $region12: #{tpu_custom_call.1} parent=5 // pred_fallthru
        _
      %p127 = scmp.lt.s32.totalorder %s12, 4
      // Predicated region
      $region21: #{tpu_custom_call.1} parent=5 // pred_check
        %p128 = pneg %p127
      $region22: #{tpu_custom_call.1} parent=5 // pred_check_branch
        %130 = sbr.rel (%p128) target = $region24
      $region23: #{tpu_custom_call.1} parent=5 // pred_region
        // Predicated region
        $region25: #{tpu_custom_call.1} parent=23 // pred_check
          %p131 = pneg %p32
        $region26: #{tpu_custom_call.1} parent=23 // pred_check_branch
          %133 = sbr.rel (%p131) target = $region28
        $region27: #{tpu_custom_call.1} parent=23 // pred_region
          %s134 = sand.u32 %s22, 1
          %s135 = scalar_lea.sflag [#allocation3], %s134
          %s136 = sand.u32 %s22, 1
          %s137 = smul.addr %s136, 64
          %s138 = scalar_lea.vmem [#allocation2], %s137
          %s139 = smul.u32 16, %s12
          %s141 = ssub.s32 1024, 1024
          %142 = vsyncadd %s135, %s141
          %s143 = smul.addr %s139, 64
          %s144 = scalar_lea.hbm %s0, %s143
          %s145 = sshll.u32 %s138, 4
          %s146 = int_to_ptr.vmem [resolvable:$true] %s145
          %151 = dma.hbm_to_vmem [thread:$0]  %s144, 1024, %s146, %s135, 64, 64, 4
        $region28: #{tpu_custom_call.1} parent=23 // pred_fallthru
          _
      $region24: #{tpu_custom_call.1} parent=5 // pred_fallthru
        _
      %p152 = scmp.le.s32.totalorder 1, %s12
      %p153 = scmp.lt.s32.totalorder %s12, 5
      %p154 = pnand %p152, %p153
      %p155 = pneg %p154
      // Predicated region
      $region29: #{tpu_custom_call.1} parent=5 // pred_check
        _
      $region30: #{tpu_custom_call.1} parent=5 // pred_check_branch
        %157 = sbr.rel (%p154) target = $region32
      $region31: #{tpu_custom_call.1} parent=5 // pred_region
        %s158 = ssub.s32 %s12, 1
        %s159 = sand.u32 %s25, 1
        %s160 = scalar_lea.sflag [#allocation3], %s159
        %s161 = sand.u32 %s25, 1
        %s162 = smul.addr %s161, 64
        %s163 = scalar_lea.vmem [#allocation2], %s162
        // Predicated region
        $region33: #{tpu_custom_call.1} parent=31 // pred_check
          %p164 = pneg %p38
        $region34: #{tpu_custom_call.1} parent=31 // pred_check_branch
          %166 = sbr.rel (%p164) target = $region36
        $region35: #{tpu_custom_call.1} parent=31 // pred_region
          %167 = dma.done %s160, 1024
        $region36: #{tpu_custom_call.1} parent=31 // pred_fallthru
          _
        %s168 = sand.u32 %s25, 1
        %s169 = scalar_lea.sflag [#allocation3], %s168
        %s170 = sand.u32 %s25, 1
        %s171 = smul.addr %s170, 64
        %s172 = scalar_lea.vmem [#allocation2], %s171
        %p173 = pneg %p38
        %p174 = pneg %p35
        %p175 = pneg %p59
        %p176 = pneg %p56
        %p177 = pneg %p80
        %p178 = pneg %p77
        %p179 = pneg %p106
        %p180 = pneg %p103
        %s181 = smul.u32 16, %s17
        %p182 = scmp.lt.s32.totalorder %s181, 63
        %s183 = scalar_select %p182, %s181, 63
        %s184 = smul.addr %s183, 4
        %s185 = scalar_lea.vmem %s3, %s184
        %s186 = smul.u32 16, %s17
        %s187 = smul.u32 16, %s17
        %p188 = scmp.lt.s32.totalorder %s187, 63
        %s189 = scalar_select %p188, %s187, 63
        %s190 = smul.addr %s189, 4
        %s191 = scalar_lea.vmem %s3, %s190
        %s192 = smul.u32 16, %s17
        %v194 = vld [vmem:[%s163] sm:$0xf]
        %v195 = vld [vmem:[%s163 + $0x4] sm:$0xf]
        %v196 = vld [vmem:[%s163 + $0x8] sm:$0xf]
        %v197 = vld [vmem:[%s163 + $0xc] sm:$0xf]
        %v198 = vld [vmem:[%s163 + $0x10] sm:$0xf]
        %v199 = vld [vmem:[%s163 + $0x14] sm:$0xf]
        %v200 = vld [vmem:[%s163 + $0x18] sm:$0xf]
        %v201 = vld [vmem:[%s163 + $0x1c] sm:$0xf]
        %v202 = vld [vmem:[%s163 + $0x20] sm:$0xf]
        %v203 = vld [vmem:[%s163 + $0x24] sm:$0xf]
        %v204 = vld [vmem:[%s163 + $0x28] sm:$0xf]
        %v205 = vld [vmem:[%s163 + $0x2c] sm:$0xf]
        %v206 = vld [vmem:[%s163 + $0x30] sm:$0xf]
        %v207 = vld [vmem:[%s163 + $0x34] sm:$0xf]
        %v208 = vld [vmem:[%s163 + $0x38] sm:$0xf]
        %v209 = vld [vmem:[%s163 + $0x3c] sm:$0xf]
        %v210 = vld [vmem:[%s1] sm:$0xf]
        %v211 = vld [vmem:[%s1 + $0x4] sm:$0xf]
        %v212 = vld [vmem:[%s1 + $0x8] sm:$0xf]
        %v213 = vld [vmem:[%s1 + $0xc] sm:$0xf]
        %v214 = vld [vmem:[%s1 + $0x10] sm:$0xf]
        %v215 = vld [vmem:[%s1 + $0x14] sm:$0xf]
        %v216 = vld [vmem:[%s1 + $0x18] sm:$0xf]
        %v217 = vld [vmem:[%s1 + $0x1c] sm:$0xf]
        %v218 = vld [vmem:[%s1 + $0x20] sm:$0xf]
        %v219 = vld [vmem:[%s1 + $0x24] sm:$0xf]
        %v220 = vld [vmem:[%s1 + $0x28] sm:$0xf]
        %v221 = vld [vmem:[%s1 + $0x2c] sm:$0xf]
        %v222 = vld [vmem:[%s1 + $0x30] sm:$0xf]
        %v223 = vld [vmem:[%s1 + $0x34] sm:$0xf]
        %v224 = vld [vmem:[%s1 + $0x38] sm:$0xf]
        %v225 = vld [vmem:[%s1 + $0x3c] sm:$0xf]
        %v226 = vld [vmem:[%s2] sm:$0x1]
        %v228 = vlaneseq
        %v229 = vshrl.u32 %v228, 7
        %v230 = vsub.s32 0, %v229
        %v231 = vrot.slane %v226, %v230
        %v249 = vunpack.c.l.b16 %v194
        %v250 = vunpack.c.l.b16 %v195
        %v251 = vunpack.c.l.b16 %v196
        %v252 = vunpack.c.l.b16 %v197
        %v253 = vunpack.c.l.b16 %v198
        %v254 = vunpack.c.l.b16 %v199
        %v255 = vunpack.c.l.b16 %v200
        %v256 = vunpack.c.l.b16 %v201
        %v257 = vunpack.c.l.b16 %v202
        %v258 = vunpack.c.l.b16 %v203
        %v259 = vunpack.c.l.b16 %v204
        %v260 = vunpack.c.l.b16 %v205
        %v261 = vunpack.c.l.b16 %v206
        %v262 = vunpack.c.l.b16 %v207
        %v263 = vunpack.c.l.b16 %v208
        %v264 = vunpack.c.l.b16 %v209
        %v265 = vpack.c.b16 %v250, %v249
        %v266 = vpack.c.b16 %v252, %v251
        %v267 = vpack.c.b16 %v254, %v253
        %v268 = vpack.c.b16 %v256, %v255
        %v269 = vpack.c.b16 %v258, %v257
        %v270 = vpack.c.b16 %v260, %v259
        %v271 = vpack.c.b16 %v262, %v261
        %v272 = vpack.c.b16 %v264, %v263
        %v297 = vunpack.c.l.b16 %v210
        %v298 = vunpack.c.l.b16 %v211
        %v299 = vunpack.c.l.b16 %v212
        %v300 = vunpack.c.l.b16 %v213
        %v301 = vunpack.c.l.b16 %v214
        %v302 = vunpack.c.l.b16 %v215
        %v303 = vunpack.c.l.b16 %v216
        %v304 = vunpack.c.l.b16 %v217
        %v305 = vunpack.c.l.b16 %v218
        %v306 = vunpack.c.l.b16 %v219
        %v307 = vunpack.c.l.b16 %v220
        %v308 = vunpack.c.l.b16 %v221
        %v309 = vunpack.c.l.b16 %v222
        %v310 = vunpack.c.l.b16 %v223
        %v311 = vunpack.c.l.b16 %v224
        %v312 = vunpack.c.l.b16 %v225
        %v313 = vpack.c.b16 %v298, %v297
        %v314 = vpack.c.b16 %v300, %v299
        %v315 = vpack.c.b16 %v302, %v301
        %v316 = vpack.c.b16 %v304, %v303
        %v317 = vpack.c.b16 %v306, %v305
        %v318 = vpack.c.b16 %v308, %v307
        %v319 = vpack.c.b16 %v310, %v309
        %v320 = vpack.c.b16 %v312, %v311
        %329 = vmatprep.subr.bf16.mxu0 0
        %330 = vmatpush1.bf16.msra.mxu0 %v313
        %331 = vmatprep.subr.bf16.mxu0 0
        %332 = vmatpush1.bf16.msra.mxu0 %v314
        %333 = vmatprep.subr.bf16.mxu0 0
        %334 = vmatpush1.bf16.msra.mxu0 %v315
        %335 = vmatprep.subr.bf16.mxu0 0
        %336 = vmatpush1.bf16.msra.mxu0 %v316
        %337 = vmatprep.subr.bf16.mxu0 0
        %338 = vmatpush1.bf16.msra.mxu0 %v317
        %339 = vmatprep.subr.bf16.mxu0 0
        %340 = vmatpush1.bf16.msra.mxu0 %v318
        %341 = vmatprep.subr.bf16.mxu0 0
        %342 = vmatpush1.bf16.msra.mxu0 %v319
        %343 = vmatprep.subr.bf16.mxu0 0
        %344 = vmatpush1.bf16.msra.mxu0 %v320
        %345 = vmatprep.subr.bf16.mxu0 0
        %346 = vmatpush1.bf16.msra.mxu0 0
        %347 = vmatprep.subr.bf16.mxu0 0
        %348 = vmatpush1.bf16.msra.mxu0 0
        %349 = vmatprep.subr.bf16.mxu0 0
        %350 = vmatpush1.bf16.msra.mxu0 0
        %351 = vmatprep.subr.bf16.mxu0 0
        %352 = vmatpush1.bf16.msra.mxu0 0
        %353 = vmatprep.subr.bf16.mxu0 0
        %354 = vmatpush1.bf16.msra.mxu0 0
        %355 = vmatprep.subr.bf16.mxu0 0
        %356 = vmatpush1.bf16.msra.mxu0 0
        %357 = vmatprep.subr.bf16.mxu0 0
        %358 = vmatpush1.bf16.msra.mxu0 0
        %359 = vmatprep.subr.bf16.mxu0 0
        %360 = vmatpush1.bf16.msra.mxu0 0
        %361 = vmatprep.mubr.bf16.mxu0 0
        %362 = vmatmul.mubr.bf16.gmra.mrb[0].mxu0 %v265
        %v363 = vpop.f32.mrb[0].mxu0
        %v364 = vadd.f32 %v231, %v363
        %v365 = vpop.f32.mrb[0].mxu0
        %v366 = vpop.f32.mrb[0].mxu0
        %v367 = vadd.f32 %v231, %v366
        %v368 = vpop.f32.mrb[0].mxu0
        %369 = vmatprep.mubr.bf16.mxu0 0
        %370 = vmatmul.mubr.bf16.gmra.mrb[0].mxu0 %v266
        %v371 = vpop.f32.mrb[0].mxu0
        %v372 = vadd.f32 %v231, %v371
        %v373 = vpop.f32.mrb[0].mxu0
        %v374 = vpop.f32.mrb[0].mxu0
        %v375 = vadd.f32 %v231, %v374
        %v376 = vpop.f32.mrb[0].mxu0
        %377 = vmatprep.mubr.bf16.mxu0 0
        %378 = vmatmul.mubr.bf16.gmra.mrb[0].mxu0 %v267
        %v379 = vpop.f32.mrb[0].mxu0
        %v380 = vadd.f32 %v231, %v379
        %v381 = vpop.f32.mrb[0].mxu0
        %v382 = vpop.f32.mrb[0].mxu0
        %v383 = vadd.f32 %v231, %v382
        %v384 = vpop.f32.mrb[0].mxu0
        %385 = vmatprep.mubr.bf16.mxu0 0
        %386 = vmatmul.mubr.bf16.gmra.mrb[0].mxu0 %v268
        %v387 = vpop.f32.mrb[0].mxu0
        %v388 = vadd.f32 %v231, %v387
        %v389 = vpop.f32.mrb[0].mxu0
        %v390 = vpop.f32.mrb[0].mxu0
        %v391 = vadd.f32 %v231, %v390
        %v392 = vpop.f32.mrb[0].mxu0
        %393 = vmatprep.mubr.bf16.mxu0 0
        %394 = vmatmul.mubr.bf16.gmra.mrb[0].mxu0 %v269
        %v395 = vpop.f32.mrb[0].mxu0
        %v396 = vadd.f32 %v231, %v395
        %v397 = vpop.f32.mrb[0].mxu0
        %v398 = vpop.f32.mrb[0].mxu0
        %v399 = vadd.f32 %v231, %v398
        %v400 = vpop.f32.mrb[0].mxu0
        %401 = vmatprep.mubr.bf16.mxu0 0
        %402 = vmatmul.mubr.bf16.gmra.mrb[0].mxu0 %v270
        %v403 = vpop.f32.mrb[0].mxu0
        %v404 = vadd.f32 %v231, %v403
        %v405 = vpop.f32.mrb[0].mxu0
        %v406 = vpop.f32.mrb[0].mxu0
        %v407 = vadd.f32 %v231, %v406
        %v408 = vpop.f32.mrb[0].mxu0
        %409 = vmatprep.mubr.bf16.mxu0 0
        %410 = vmatmul.mubr.bf16.gmra.mrb[0].mxu0 %v271
        %v411 = vpop.f32.mrb[0].mxu0
        %v412 = vadd.f32 %v231, %v411
        %v413 = vpop.f32.mrb[0].mxu0
        %v414 = vpop.f32.mrb[0].mxu0
        %v415 = vadd.f32 %v231, %v414
        %v416 = vpop.f32.mrb[0].mxu0
        %417 = vmatprep.mubr.bf16.mxu0 0
        %418 = vmatmul.mubr.bf16.gmra.mrb[0].mxu0 %v272
        %v419 = vpop.f32.mrb[0].mxu0
        %v420 = vadd.f32 %v231, %v419
        %v421 = vpop.f32.mrb[0].mxu0
        %v422 = vpop.f32.mrb[0].mxu0
        %v423 = vadd.f32 %v231, %v422
        %v424 = vpop.f32.mrb[0].mxu0
        %425 = vdwg.mxu0
        %v426 = vmax.f32 %v364, 0.0
        %v427 = vmax.f32 %v367, 0.0
        %v428 = vmax.f32 %v372, 0.0
        %v429 = vmax.f32 %v375, 0.0
        %v430 = vmax.f32 %v380, 0.0
        %v431 = vmax.f32 %v383, 0.0
        %v432 = vmax.f32 %v388, 0.0
        %v433 = vmax.f32 %v391, 0.0
        %v434 = vmax.f32 %v396, 0.0
        %v435 = vmax.f32 %v399, 0.0
        %v436 = vmax.f32 %v404, 0.0
        %v437 = vmax.f32 %v407, 0.0
        %v438 = vmax.f32 %v412, 0.0
        %v439 = vmax.f32 %v415, 0.0
        %v440 = vmax.f32 %v420, 0.0
        %v441 = vmax.f32 %v423, 0.0
        %v442 = vpack.c.bf16 %v427, %v426
        %v443 = vpack.c.bf16 %v429, %v428
        %v444 = vpack.c.bf16 %v431, %v430
        %v445 = vpack.c.bf16 %v433, %v432
        %v446 = vpack.c.bf16 %v435, %v434
        %v447 = vpack.c.bf16 %v437, %v436
        %v448 = vpack.c.bf16 %v439, %v438
        %v449 = vpack.c.bf16 %v441, %v440
        %v458 = vunpack.c.l.b16 %v442
        %v459 = vunpack.c.h.b16 %v442
        %v460 = vunpack.c.l.b16 %v443
        %v461 = vunpack.c.h.b16 %v443
        %v462 = vunpack.c.l.b16 %v444
        %v463 = vunpack.c.h.b16 %v444
        %v464 = vunpack.c.l.b16 %v445
        %v465 = vunpack.c.h.b16 %v445
        %v466 = vunpack.c.l.b16 %v446
        %v467 = vunpack.c.h.b16 %v446
        %v468 = vunpack.c.l.b16 %v447
        %v469 = vunpack.c.h.b16 %v447
        %v470 = vunpack.c.l.b16 %v448
        %v471 = vunpack.c.h.b16 %v448
        %v472 = vunpack.c.l.b16 %v449
        %v473 = vunpack.c.h.b16 %v449
        %v474 = vpack.c.b16 %v458, %v458
        %v475 = vpack.c.b16 %v459, %v459
        %v476 = vpack.c.b16 %v460, %v460
        %v477 = vpack.c.b16 %v461, %v461
        %v478 = vpack.c.b16 %v462, %v462
        %v479 = vpack.c.b16 %v463, %v463
        %v480 = vpack.c.b16 %v464, %v464
        %v481 = vpack.c.b16 %v465, %v465
        %v482 = vpack.c.b16 %v466, %v466
        %v483 = vpack.c.b16 %v467, %v467
        %v484 = vpack.c.b16 %v468, %v468
        %v485 = vpack.c.b16 %v469, %v469
        %v486 = vpack.c.b16 %v470, %v470
        %v487 = vpack.c.b16 %v471, %v471
        %v488 = vpack.c.b16 %v472, %v472
        %v489 = vpack.c.b16 %v473, %v473
        %vm506 = vcmask 519168
        %507 = vst.msk [vmem:[%s191] sm:$0xf] %vm506, %v474
        %508 = vst.msk [vmem:[%s191 + $0x4] sm:$0xf] %vm506, %v475
        %509 = vst.msk [vmem:[%s191 + $0x8] sm:$0xf] %vm506, %v476
        %510 = vst.msk [vmem:[%s191 + $0xc] sm:$0xf] %vm506, %v477
        %511 = vst.msk [vmem:[%s191 + $0x10] sm:$0xf] %vm506, %v478
        %512 = vst.msk [vmem:[%s191 + $0x14] sm:$0xf] %vm506, %v479
        %513 = vst.msk [vmem:[%s191 + $0x18] sm:$0xf] %vm506, %v480
        %514 = vst.msk [vmem:[%s191 + $0x1c] sm:$0xf] %vm506, %v481
        %515 = vst.msk [vmem:[%s191 + $0x20] sm:$0xf] %vm506, %v482
        %516 = vst.msk [vmem:[%s191 + $0x24] sm:$0xf] %vm506, %v483
        %517 = vst.msk [vmem:[%s191 + $0x28] sm:$0xf] %vm506, %v484
        %518 = vst.msk [vmem:[%s191 + $0x2c] sm:$0xf] %vm506, %v485
        %519 = vst.msk [vmem:[%s191 + $0x30] sm:$0xf] %vm506, %v486
        %520 = vst.msk [vmem:[%s191 + $0x34] sm:$0xf] %vm506, %v487
        %521 = vst.msk [vmem:[%s191 + $0x38] sm:$0xf] %vm506, %v488
        %522 = vst.msk [vmem:[%s191 + $0x3c] sm:$0xf] %vm506, %v489
        %s523 = smul.u32 16, %s17
        %p524 = scmp.lt.s32.totalorder %s523, 63
        %s525 = scalar_select %p524, %s523, 63
        %s526 = smul.addr %s525, 4
        %s527 = scalar_lea.vmem %s3, %s526
        // Predicated region
        $region37: #{tpu_custom_call.1} parent=31 // pred_check
          %p528 = pneg %p103
        $region38: #{tpu_custom_call.1} parent=31 // pred_check_branch
          %530 = sbr.rel (%p528) target = $region40
        $region39: #{tpu_custom_call.1} parent=31 // pred_region
          %s531 = smul.u32 16, %s17
        $region40: #{tpu_custom_call.1} parent=31 // pred_fallthru
          _
      $region32: #{tpu_custom_call.1} parent=5 // pred_fallthru
        _
      %p532 = scmp.le.s32.totalorder 2, %s12
      // Predicated region
      $region41: #{tpu_custom_call.1} parent=5 // pred_check
        %p533 = pneg %p532
      $region42: #{tpu_custom_call.1} parent=5 // pred_check_branch
        %535 = sbr.rel (%p533) target = $region44
      $region43: #{tpu_custom_call.1} parent=5 // pred_region
        %s536 = ssub.s32 %s12, 2
        // Predicated region
        $region45: #{tpu_custom_call.1} parent=43 // pred_check
          %p537 = pneg %p109
        $region46: #{tpu_custom_call.1} parent=43 // pred_check_branch
          %539 = sbr.rel (%p537) target = $region48
        $region47: #{tpu_custom_call.1} parent=43 // pred_region
          %s540 = smul.u32 16, %s18
          %p541 = scmp.lt.s32.totalorder %s540, 63
          %s542 = scalar_select %p541, %s540, 63
          %s543 = smul.addr %s542, 4
          %s544 = scalar_lea.vmem %s3, %s543
        $region48: #{tpu_custom_call.1} parent=43 // pred_fallthru
          _
      $region44: #{tpu_custom_call.1} parent=5 // pred_fallthru
        _
    $region6: #{tpu_custom_call.1} parent=1 // loop_footer
      %s16 = sadd.s32 1, %s12
    $region7: #{tpu_custom_call.1} parent=1 // loop_footer_branch
      %11 = sbr.rel target = $region3
    $region8: #{tpu_custom_call.1} parent=1 // loop_exit
      _
    %545 = vsyncpa [#allocation3], 1
    %s546 = scalar_lea.sflag [#allocation3], 1
    %547 = vsyncpa %s546, 1

// kernel: tpu_custom_call.1
$region0: #{tpu_custom_call.1}
  #allocation0 [shape = 'u32[]', space=smem, size = 0x4, offset = 0x4, fixed_abs, tag = 'smem constant byte address 0x4 - core index']
  #allocation1 [shape = 'u32[144,128]{1,0:T(1,128)}', space=vmem, size = 0x12000, scoped, tag = 'internal scratch']
  %s0 = inlined_call_operand.hbm [shape: bf16[512,128], index: 0, kind: input, shape index: {}]
  %s1 = inlined_call_operand.vmem [shape: bf16[128,64], index: 1, kind: input, shape index: {}]
  %s2 = inlined_call_operand.vmem [shape: f32[1,64], index: 2, kind: input, shape index: {}]
  %s3 = inlined_call_operand.vmem [shape: bf16[512,64], index: 3, kind: output, shape index: {}]
  %s4 = sld [smem:[#allocation0]]
  $region49: #{tpu_custom_call.1} parent=0
    _
  %s6 = ssub.s32 1, %s4
  %s7 = scalar_select 0, %s6, %s4
  $region1: #{tpu_custom_call.1} parent=0
    #allocation2 [shape = 'u8[65536]{0}', space=vmem, size = 0x10000, scoped, tag = 'input window, operand 0']
    #allocation3 [shape = 's32[2]{0}', space=sflag, size = 0x8, scoped, tag = 'scoped memory for tpu_custom_call.1']
    %8 = vsyncpa [#allocation3], 0
    %s9 = scalar_lea.sflag [#allocation3], 1
    %10 = vsyncpa %s9, 0
    loop: start=0, step=1, limit=6
    $region2: #{tpu_custom_call.1} parent=1 // loop_pre_header
      _
    $region3: #{tpu_custom_call.1} parent=1 // loop_header
      %s12 = sphi 0, %s16
      %p13 = scmp.ge.s32.totalorder %s12, 6
      %s22 = sphi 0, %s24
      %s25 = sphi 0, %s22
      %s26 = sphi 0, %s25
      %s42 = sphi 0, %s26
      %s46 = sphi 0, %s46
      %s48 = sphi 0, %s46
      %s49 = sphi 0, %s48
      %s63 = sphi 0, %s49
      %s67 = sphi 0, %s67
      %s69 = sphi 0, %s67
      %s70 = sphi 0, %s69
      %s84 = sphi 0, %s70
      %s90 = sphi 0, %s92
      %s93 = sphi 0, %s90
      %s94 = sphi 0, %s93
      %s110 = sphi 0, %s94
    $region4: #{tpu_custom_call.1} parent=1 // loop_header_branch
      %15 = sbr.rel (%p13) target = $region8
    $region5: #{tpu_custom_call.1} parent=1 // loop_body
      %s17 = ssub.s32 %s12, 1
      %s18 = ssub.s32 %s12, 2
      %s19 = sadd.s32 %s12, 1
      %s20 = ssub.s32 %s12, %s19
      %p21 = scmp.eq.s32.totalorder %s20, 0
      %s23 = sadd.s32 %s22, 1
      %s24 = scalar_select %p21, %s22, %s23
      %p27 = pneg %p21
      %p28 = scmp.eq.s32.totalorder %s12, 3
      %p29 = por %p27, %p28
      %p30 = scmp.ne.s32.totalorder %s22, %s25
      %p31 = scmp.eq.s32.totalorder %s12, 0
      %p32 = por %p30, %p31
      %p33 = scmp.ne.s32.totalorder %s22, %s25
      %p34 = scmp.eq.s32.totalorder %s17, 3
      %p35 = por %p33, %p34
      %p36 = scmp.ne.s32.totalorder %s25, %s26
      %p37 = scmp.eq.s32.totalorder %s17, 0
      %p38 = por %p36, %p37
      %p39 = scmp.ne.s32.totalorder %s25, %s26
      %p40 = scmp.eq.s32.totalorder %s18, 3
      %p41 = por %p39, %p40
      %p43 = scmp.ne.s32.totalorder %s26, %s42
      %p44 = scmp.eq.s32.totalorder %s18, 0
      %p45 = por %p43, %p44
      %s47 = sadd.s32 %s46, 1
      %p50 = scmp.eq.s32.totalorder %s12, 3
      %p51 = scmp.ne.s32.totalorder %s46, %s48
      %p52 = scmp.eq.s32.totalorder %s12, 0
      %p53 = por %p51, %p52
      %p54 = scmp.ne.s32.totalorder %s46, %s48
      %p55 = scmp.eq.s32.totalorder %s17, 3
      %p56 = por %p54, %p55
      %p57 = scmp.ne.s32.totalorder %s48, %s49
      %p58 = scmp.eq.s32.totalorder %s17, 0
      %p59 = por %p57, %p58
      %p60 = scmp.ne.s32.totalorder %s48, %s49
      %p61 = scmp.eq.s32.totalorder %s18, 3
      %p62 = por %p60, %p61
      %p64 = scmp.ne.s32.totalorder %s49, %s63
      %p65 = scmp.eq.s32.totalorder %s18, 0
      %p66 = por %p64, %p65
      %s68 = sadd.s32 %s67, 1
      %p71 = scmp.eq.s32.totalorder %s12, 3
      %p72 = scmp.ne.s32.totalorder %s67, %s69
      %p73 = scmp.eq.s32.totalorder %s12, 0
      %p74 = por %p72, %p73
      %p75 = scmp.ne.s32.totalorder %s67, %s69
      %p76 = scmp.eq.s32.totalorder %s17, 3
      %p77 = por %p75, %p76
      %p78 = scmp.ne.s32.totalorder %s69, %s70
      %p79 = scmp.eq.s32.totalorder %s17, 0
      %p80 = por %p78, %p79
      %p81 = scmp.ne.s32.totalorder %s69, %s70
      %p82 = scmp.eq.s32.totalorder %s18, 3
      %p83 = por %p81, %p82
      %p85 = scmp.ne.s32.totalorder %s70, %s84
      %p86 = scmp.eq.s32.totalorder %s18, 0
      %p87 = por %p85, %p86
      %s88 = ssub.s32 %s12, %s19
      %p89 = scmp.eq.s32.totalorder %s88, 0
      %s91 = sadd.s32 %s90, 1
      %s92 = scalar_select %p89, %s90, %s91
      %p95 = pneg %p89
      %p96 = scmp.eq.s32.totalorder %s12, 3
      %p97 = por %p95, %p96
      %p98 = scmp.ne.s32.totalorder %s90, %s93
      %p99 = scmp.eq.s32.totalorder %s12, 0
      %p100 = por %p98, %p99
      %p101 = scmp.ne.s32.totalorder %s90, %s93
      %p102 = scmp.eq.s32.totalorder %s17, 3
      %p103 = por %p101, %p102
      %p104 = scmp.ne.s32.totalorder %s93, %s94
      %p105 = scmp.eq.s32.totalorder %s17, 0
      %p106 = por %p104, %p105
      %p107 = scmp.ne.s32.totalorder %s93, %s94
      %p108 = scmp.eq.s32.totalorder %s18, 3
      %p109 = por %p107, %p108
      %p111 = scmp.ne.s32.totalorder %s94, %s110
      %p112 = scmp.eq.s32.totalorder %s18, 0
      %p113 = por %p111, %p112
      %p114 = scmp.le.s32.totalorder 1, %s12
      %p115 = scmp.lt.s32.totalorder %s12, 5
      %p116 = pnand %p114, %p115
      %p117 = pneg %p116
      // Predicated region
      $region9: #{tpu_custom_call.1} parent=5 // pred_check
        _
      $region10: #{tpu_custom_call.1} parent=5 // pred_check_branch
        %119 = sbr.rel (%p116) target = $region12
      $region11: #{tpu_custom_call.1} parent=5 // pred_region
        %s120 = ssub.s32 %s12, 1
        // Predicated region
        $region13: #{tpu_custom_call.1} parent=11 // pred_check
          %p121 = pneg %p59
        $region14: #{tpu_custom_call.1} parent=11 // pred_check_branch
          %123 = sbr.rel (%p121) target = $region16
        $region15: #{tpu_custom_call.1} parent=11 // pred_region
          _
        $region16: #{tpu_custom_call.1} parent=11 // pred_fallthru
          _
        // Predicated region
        $region17: #{tpu_custom_call.1} parent=11 // pred_check
          %p124 = pneg %p80
        $region18: #{tpu_custom_call.1} parent=11 // pred_check_branch
          %126 = sbr.rel (%p124) target = $region20
        $region19: #{tpu_custom_call.1} parent=11 // pred_region
          _
        $region20: #{tpu_custom_call.1} parent=11 // pred_fallthru
          _
      $region12: #{tpu_custom_call.1} parent=5 // pred_fallthru
        _
      %p127 = scmp.lt.s32.totalorder %s12, 4
      // Predicated region
      $region21: #{tpu_custom_call.1} parent=5 // pred_check
        %p128 = pneg %p127
      $region22: #{tpu_custom_call.1} parent=5 // pred_check_branch
        %130 = sbr.rel (%p128) target = $region24
      $region23: #{tpu_custom_call.1} parent=5 // pred_region
        // Predicated region
        $region25: #{tpu_custom_call.1} parent=23 // pred_check
          %p131 = pneg %p32
        $region26: #{tpu_custom_call.1} parent=23 // pred_check_branch
          %133 = sbr.rel (%p131) target = $region28
        $region27: #{tpu_custom_call.1} parent=23 // pred_region
          %s134 = sand.u32 %s22, 1
          %s135 = scalar_lea.sflag [#allocation3], %s134
          %s136 = sand.u32 %s22, 1
          %s137 = smul.addr %s136, 64
          %s138 = scalar_lea.vmem [#allocation2], %s137
          %s139 = smul.u32 16, %s12
          %s141 = ssub.s32 1024, 1024
          %142 = vsyncadd %s135, %s141
          %s143 = smul.addr %s139, 64
          %s144 = scalar_lea.hbm %s0, %s143
          %s145 = sshll.u32 %s138, 4
          %s146 = int_to_ptr.vmem [resolvable:$true] %s145
          %151 = dma.hbm_to_vmem [thread:$0]  %s144, 1024, %s146, %s135, 64, 64, 4
        $region28: #{tpu_custom_call.1} parent=23 // pred_fallthru
          _
      $region24: #{tpu_custom_call.1} parent=5 // pred_fallthru
        _
      %p152 = scmp.le.s32.totalorder 1, %s12
      %p153 = scmp.lt.s32.totalorder %s12, 5
      %p154 = pnand %p152, %p153
      %p155 = pneg %p154
      // Predicated region
      $region29: #{tpu_custom_call.1} parent=5 // pred_check
        _
      $region30: #{tpu_custom_call.1} parent=5 // pred_check_branch
        %157 = sbr.rel (%p154) target = $region32
      $region31: #{tpu_custom_call.1} parent=5 // pred_region
        %s158 = ssub.s32 %s12, 1
        %s159 = sand.u32 %s25, 1
        %s160 = scalar_lea.sflag [#allocation3], %s159
        %s161 = sand.u32 %s25, 1
        %s162 = smul.addr %s161, 64
        %s163 = scalar_lea.vmem [#allocation2], %s162
        // Predicated region
        $region33: #{tpu_custom_call.1} parent=31 // pred_check
          %p164 = pneg %p38
        $region34: #{tpu_custom_call.1} parent=31 // pred_check_branch
          %166 = sbr.rel (%p164) target = $region36
        $region35: #{tpu_custom_call.1} parent=31 // pred_region
          %167 = dma.done %s160, 1024
        $region36: #{tpu_custom_call.1} parent=31 // pred_fallthru
          _
        %s168 = sand.u32 %s25, 1
        %s169 = scalar_lea.sflag [#allocation3], %s168
        %s170 = sand.u32 %s25, 1
        %s171 = smul.addr %s170, 64
        %s172 = scalar_lea.vmem [#allocation2], %s171
        %p173 = pneg %p38
        %p174 = pneg %p35
        %p175 = pneg %p59
        %p176 = pneg %p56
        %p177 = pneg %p80
        %p178 = pneg %p77
        %p179 = pneg %p106
        %p180 = pneg %p103
        %s181 = smul.u32 16, %s17
        %p182 = scmp.lt.s32.totalorder %s181, 63
        %s183 = scalar_select %p182, %s181, 63
        %s184 = smul.addr %s183, 4
        %s185 = scalar_lea.vmem %s3, %s184
        %s186 = smul.u32 16, %s17
        %s187 = smul.u32 16, %s17
        %p188 = scmp.lt.s32.totalorder %s187, 63
        %s189 = scalar_select %p188, %s187, 63
        %s190 = smul.addr %s189, 4
        %s191 = scalar_lea.vmem %s3, %s190
        %s192 = smul.u32 16, %s17
        %v194 = vld [vmem:[%s163] sm:$0xf]
        %v195 = vld [vmem:[%s163 + $0x4] sm:$0xf]
        %v196 = vld [vmem:[%s163 + $0x8] sm:$0xf]
        %v197 = vld [vmem:[%s163 + $0xc] sm:$0xf]
        %v198 = vld [vmem:[%s163 + $0x10] sm:$0xf]
        %v199 = vld [vmem:[%s163 + $0x14] sm:$0xf]
        %v200 = vld [vmem:[%s163 + $0x18] sm:$0xf]
        %v201 = vld [vmem:[%s163 + $0x1c] sm:$0xf]
        %v202 = vld [vmem:[%s163 + $0x20] sm:$0xf]
        %v203 = vld [vmem:[%s163 + $0x24] sm:$0xf]
        %v204 = vld [vmem:[%s163 + $0x28] sm:$0xf]
        %v205 = vld [vmem:[%s163 + $0x2c] sm:$0xf]
        %v206 = vld [vmem:[%s163 + $0x30] sm:$0xf]
        %v207 = vld [vmem:[%s163 + $0x34] sm:$0xf]
        %v208 = vld [vmem:[%s163 + $0x38] sm:$0xf]
        %v209 = vld [vmem:[%s163 + $0x3c] sm:$0xf]
        %v210 = vld [vmem:[%s1] sm:$0xf]
        %v211 = vld [vmem:[%s1 + $0x4] sm:$0xf]
        %v212 = vld [vmem:[%s1 + $0x8] sm:$0xf]
        %v213 = vld [vmem:[%s1 + $0xc] sm:$0xf]
        %v214 = vld [vmem:[%s1 + $0x10] sm:$0xf]
        %v215 = vld [vmem:[%s1 + $0x14] sm:$0xf]
        %v216 = vld [vmem:[%s1 + $0x18] sm:$0xf]
        %v217 = vld [vmem:[%s1 + $0x1c] sm:$0xf]
        %v218 = vld [vmem:[%s1 + $0x20] sm:$0xf]
        %v219 = vld [vmem:[%s1 + $0x24] sm:$0xf]
        %v220 = vld [vmem:[%s1 + $0x28] sm:$0xf]
        %v221 = vld [vmem:[%s1 + $0x2c] sm:$0xf]
        %v222 = vld [vmem:[%s1 + $0x30] sm:$0xf]
        %v223 = vld [vmem:[%s1 + $0x34] sm:$0xf]
        %v224 = vld [vmem:[%s1 + $0x38] sm:$0xf]
        %v225 = vld [vmem:[%s1 + $0x3c] sm:$0xf]
        %v226 = vld [vmem:[%s2] sm:$0x1]
        %v228 = vlaneseq
        %v229 = vshrl.u32 %v228, 7
        %v230 = vsub.s32 0, %v229
        %v231 = vrot.slane %v226, %v230
        %v249 = vunpack.c.l.b16 %v194
        %v250 = vunpack.c.l.b16 %v195
        %v251 = vunpack.c.l.b16 %v196
        %v252 = vunpack.c.l.b16 %v197
        %v253 = vunpack.c.l.b16 %v198
        %v254 = vunpack.c.l.b16 %v199
        %v255 = vunpack.c.l.b16 %v200
        %v256 = vunpack.c.l.b16 %v201
        %v257 = vunpack.c.l.b16 %v202
        %v258 = vunpack.c.l.b16 %v203
        %v259 = vunpack.c.l.b16 %v204
        %v260 = vunpack.c.l.b16 %v205
        %v261 = vunpack.c.l.b16 %v206
        %v262 = vunpack.c.l.b16 %v207
        %v263 = vunpack.c.l.b16 %v208
        %v264 = vunpack.c.l.b16 %v209
        %v265 = vpack.c.b16 %v250, %v249
        %v266 = vpack.c.b16 %v252, %v251
        %v267 = vpack.c.b16 %v254, %v253
        %v268 = vpack.c.b16 %v256, %v255
        %v269 = vpack.c.b16 %v258, %v257
        %v270 = vpack.c.b16 %v260, %v259
        %v271 = vpack.c.b16 %v262, %v261
        %v272 = vpack.c.b16 %v264, %v263
        %v297 = vunpack.c.l.b16 %v210
        %v298 = vunpack.c.l.b16 %v211
        %v299 = vunpack.c.l.b16 %v212
        %v300 = vunpack.c.l.b16 %v213
        %v301 = vunpack.c.l.b16 %v214
        %v302 = vunpack.c.l.b16 %v215
        %v303 = vunpack.c.l.b16 %v216
        %v304 = vunpack.c.l.b16 %v217
        %v305 = vunpack.c.l.b16 %v218
        %v306 = vunpack.c.l.b16 %v219
        %v307 = vunpack.c.l.b16 %v220
        %v308 = vunpack.c.l.b16 %v221
        %v309 = vunpack.c.l.b16 %v222
        %v310 = vunpack.c.l.b16 %v223
        %v311 = vunpack.c.l.b16 %v224
        %v312 = vunpack.c.l.b16 %v225
        %v313 = vpack.c.b16 %v298, %v297
        %v314 = vpack.c.b16 %v300, %v299
        %v315 = vpack.c.b16 %v302, %v301
        %v316 = vpack.c.b16 %v304, %v303
        %v317 = vpack.c.b16 %v306, %v305
        %v318 = vpack.c.b16 %v308, %v307
        %v319 = vpack.c.b16 %v310, %v309
        %v320 = vpack.c.b16 %v312, %v311
        %329 = vmatprep.subr.bf16.mxu0 0
        %330 = vmatpush1.bf16.msra.mxu0 %v313
        %331 = vmatprep.subr.bf16.mxu0 0
        %332 = vmatpush1.bf16.msra.mxu0 %v314
        %333 = vmatprep.subr.bf16.mxu0 0
        %334 = vmatpush1.bf16.msra.mxu0 %v315
        %335 = vmatprep.subr.bf16.mxu0 0
        %336 = vmatpush1.bf16.msra.mxu0 %v316
        %337 = vmatprep.subr.bf16.mxu0 0
        %338 = vmatpush1.bf16.msra.mxu0 %v317
        %339 = vmatprep.subr.bf16.mxu0 0
        %340 = vmatpush1.bf16.msra.mxu0 %v318
        %341 = vmatprep.subr.bf16.mxu0 0
        %342 = vmatpush1.bf16.msra.mxu0 %v319
        %343 = vmatprep.subr.bf16.mxu0 0
        %344 = vmatpush1.bf16.msra.mxu0 %v320
        %345 = vmatprep.subr.bf16.mxu0 0
        %346 = vmatpush1.bf16.msra.mxu0 0
        %347 = vmatprep.subr.bf16.mxu0 0
        %348 = vmatpush1.bf16.msra.mxu0 0
        %349 = vmatprep.subr.bf16.mxu0 0
        %350 = vmatpush1.bf16.msra.mxu0 0
        %351 = vmatprep.subr.bf16.mxu0 0
        %352 = vmatpush1.bf16.msra.mxu0 0
        %353 = vmatprep.subr.bf16.mxu0 0
        %354 = vmatpush1.bf16.msra.mxu0 0
        %355 = vmatprep.subr.bf16.mxu0 0
        %356 = vmatpush1.bf16.msra.mxu0 0
        %357 = vmatprep.subr.bf16.mxu0 0
        %358 = vmatpush1.bf16.msra.mxu0 0
        %359 = vmatprep.subr.bf16.mxu0 0
        %360 = vmatpush1.bf16.msra.mxu0 0
        %361 = vmatprep.mubr.bf16.mxu0 0
        %362 = vmatmul.mubr.bf16.gmra.mrb[0].mxu0 %v265
        %v363 = vpop.f32.mrb[0].mxu0
        %v364 = vadd.f32 %v231, %v363
        %v365 = vpop.f32.mrb[0].mxu0
        %v366 = vpop.f32.mrb[0].mxu0
        %v367 = vadd.f32 %v231, %v366
        %v368 = vpop.f32.mrb[0].mxu0
        %369 = vmatprep.mubr.bf16.mxu0 0
        %370 = vmatmul.mubr.bf16.gmra.mrb[0].mxu0 %v266
        %v371 = vpop.f32.mrb[0].mxu0
        %v372 = vadd.f32 %v231, %v371
        %v373 = vpop.f32.mrb[0].mxu0
        %v374 = vpop.f32.mrb[0].mxu0
        %v375 = vadd.f32 %v231, %v374
        %v376 = vpop.f32.mrb[0].mxu0
        %377 = vmatprep.mubr.bf16.mxu0 0
        %378 = vmatmul.mubr.bf16.gmra.mrb[0].mxu0 %v267
        %v379 = vpop.f32.mrb[0].mxu0
        %v380 = vadd.f32 %v231, %v379
        %v381 = vpop.f32.mrb[0].mxu0
        %v382 = vpop.f32.mrb[0].mxu0
        %v383 = vadd.f32 %v231, %v382
        %v384 = vpop.f32.mrb[0].mxu0
        %385 = vmatprep.mubr.bf16.mxu0 0
        %386 = vmatmul.mubr.bf16.gmra.mrb[0].mxu0 %v268
        %v387 = vpop.f32.mrb[0].mxu0
        %v388 = vadd.f32 %v231, %v387
        %v389 = vpop.f32.mrb[0].mxu0
        %v390 = vpop.f32.mrb[0].mxu0
        %v391 = vadd.f32 %v231, %v390
        %v392 = vpop.f32.mrb[0].mxu0
        %393 = vmatprep.mubr.bf16.mxu0 0
        %394 = vmatmul.mubr.bf16.gmra.mrb[0].mxu0 %v269
        %v395 = vpop.f32.mrb[0].mxu0
        %v396 = vadd.f32 %v231, %v395
        %v397 = vpop.f32.mrb[0].mxu0
        %v398 = vpop.f32.mrb[0].mxu0
        %v399 = vadd.f32 %v231, %v398
        %v400 = vpop.f32.mrb[0].mxu0
        %401 = vmatprep.mubr.bf16.mxu0 0
        %402 = vmatmul.mubr.bf16.gmra.mrb[0].mxu0 %v270
        %v403 = vpop.f32.mrb[0].mxu0
        %v404 = vadd.f32 %v231, %v403
        %v405 = vpop.f32.mrb[0].mxu0
        %v406 = vpop.f32.mrb[0].mxu0
        %v407 = vadd.f32 %v231, %v406
        %v408 = vpop.f32.mrb[0].mxu0
        %409 = vmatprep.mubr.bf16.mxu0 0
        %410 = vmatmul.mubr.bf16.gmra.mrb[0].mxu0 %v271
        %v411 = vpop.f32.mrb[0].mxu0
        %v412 = vadd.f32 %v231, %v411
        %v413 = vpop.f32.mrb[0].mxu0
        %v414 = vpop.f32.mrb[0].mxu0
        %v415 = vadd.f32 %v231, %v414
        %v416 = vpop.f32.mrb[0].mxu0
        %417 = vmatprep.mubr.bf16.mxu0 0
        %418 = vmatmul.mubr.bf16.gmra.mrb[0].mxu0 %v272
        %v419 = vpop.f32.mrb[0].mxu0
        %v420 = vadd.f32 %v231, %v419
        %v421 = vpop.f32.mrb[0].mxu0
        %v422 = vpop.f32.mrb[0].mxu0
        %v423 = vadd.f32 %v231, %v422
        %v424 = vpop.f32.mrb[0].mxu0
        %425 = vdwg.mxu0
        %v426 = vmax.f32 %v364, 0.0
        %v427 = vmax.f32 %v367, 0.0
        %v428 = vmax.f32 %v372, 0.0
        %v429 = vmax.f32 %v375, 0.0
        %v430 = vmax.f32 %v380, 0.0
        %v431 = vmax.f32 %v383, 0.0
        %v432 = vmax.f32 %v388, 0.0
        %v433 = vmax.f32 %v391, 0.0
        %v434 = vmax.f32 %v396, 0.0
        %v435 = vmax.f32 %v399, 0.0
        %v436 = vmax.f32 %v404, 0.0
        %v437 = vmax.f32 %v407, 0.0
        %v438 = vmax.f32 %v412, 0.0
        %v439 = vmax.f32 %v415, 0.0
        %v440 = vmax.f32 %v420, 0.0
        %v441 = vmax.f32 %v423, 0.0
        %v442 = vpack.c.bf16 %v427, %v426
        %v443 = vpack.c.bf16 %v429, %v428
        %v444 = vpack.c.bf16 %v431, %v430
        %v445 = vpack.c.bf16 %v433, %v432
        %v446 = vpack.c.bf16 %v435, %v434
        %v447 = vpack.c.bf16 %v437, %v436
        %v448 = vpack.c.bf16 %v439, %v438
        %v449 = vpack.c.bf16 %v441, %v440
        %v458 = vunpack.c.l.b16 %v442
        %v459 = vunpack.c.h.b16 %v442
        %v460 = vunpack.c.l.b16 %v443
        %v461 = vunpack.c.h.b16 %v443
        %v462 = vunpack.c.l.b16 %v444
        %v463 = vunpack.c.h.b16 %v444
        %v464 = vunpack.c.l.b16 %v445
        %v465 = vunpack.c.h.b16 %v445
        %v466 = vunpack.c.l.b16 %v446
        %v467 = vunpack.c.h.b16 %v446
        %v468 = vunpack.c.l.b16 %v447
        %v469 = vunpack.c.h.b16 %v447
        %v470 = vunpack.c.l.b16 %v448
        %v471 = vunpack.c.h.b16 %v448
        %v472 = vunpack.c.l.b16 %v449
        %v473 = vunpack.c.h.b16 %v449
        %v474 = vpack.c.b16 %v458, %v458
        %v475 = vpack.c.b16 %v459, %v459
        %v476 = vpack.c.b16 %v460, %v460
        %v477 = vpack.c.b16 %v461, %v461
        %v478 = vpack.c.b16 %v462, %v462
        %v479 = vpack.c.b16 %v463, %v463
        %v480 = vpack.c.b16 %v464, %v464
        %v481 = vpack.c.b16 %v465, %v465
        %v482 = vpack.c.b16 %v466, %v466
        %v483 = vpack.c.b16 %v467, %v467
        %v484 = vpack.c.b16 %v468, %v468
        %v485 = vpack.c.b16 %v469, %v469
        %v486 = vpack.c.b16 %v470, %v470
        %v487 = vpack.c.b16 %v471, %v471
        %v488 = vpack.c.b16 %v472, %v472
        %v489 = vpack.c.b16 %v473, %v473
        %vm506 = vcmask 519168
        %507 = vst.msk [vmem:[%s191] sm:$0xf] %vm506, %v474
        %508 = vst.msk [vmem:[%s191 + $0x4] sm:$0xf] %vm506, %v475
        %509 = vst.msk [vmem:[%s191 + $0x8] sm:$0xf] %vm506, %v476
        %510 = vst.msk [vmem:[%s191 + $0xc] sm:$0xf] %vm506, %v477
        %511 = vst.msk [vmem:[%s191 + $0x10] sm:$0xf] %vm506, %v478
        %512 = vst.msk [vmem:[%s191 + $0x14] sm:$0xf] %vm506, %v479
        %513 = vst.msk [vmem:[%s191 + $0x18] sm:$0xf] %vm506, %v480
        %514 = vst.msk [vmem:[%s191 + $0x1c] sm:$0xf] %vm506, %v481
        %515 = vst.msk [vmem:[%s191 + $0x20] sm:$0xf] %vm506, %v482
        %516 = vst.msk [vmem:[%s191 + $0x24] sm:$0xf] %vm506, %v483
        %517 = vst.msk [vmem:[%s191 + $0x28] sm:$0xf] %vm506, %v484
        %518 = vst.msk [vmem:[%s191 + $0x2c] sm:$0xf] %vm506, %v485
        %519 = vst.msk [vmem:[%s191 + $0x30] sm:$0xf] %vm506, %v486
        %520 = vst.msk [vmem:[%s191 + $0x34] sm:$0xf] %vm506, %v487
        %521 = vst.msk [vmem:[%s191 + $0x38] sm:$0xf] %vm506, %v488
        %522 = vst.msk [vmem:[%s191 + $0x3c] sm:$0xf] %vm506, %v489
        %s523 = smul.u32 16, %s17
        %p524 = scmp.lt.s32.totalorder %s523, 63
        %s525 = scalar_select %p524, %s523, 63
        %s526 = smul.addr %s525, 4
        %s527 = scalar_lea.vmem %s3, %s526
        // Predicated region
        $region37: #{tpu_custom_call.1} parent=31 // pred_check
          %p528 = pneg %p103
        $region38: #{tpu_custom_call.1} parent=31 // pred_check_branch
          %530 = sbr.rel (%p528) target = $region40
        $region39: #{tpu_custom_call.1} parent=31 // pred_region
          %s531 = smul.u32 16, %s17
        $region40: #{tpu_custom_call.1} parent=31 // pred_fallthru
          _
      $region32: #{tpu_custom_call.1} parent=5 // pred_fallthru
        _
      %p532 = scmp.le.s32.totalorder 2, %s12
      // Predicated region
      $region41: #{tpu_custom_call.1} parent=5 // pred_check
        %p533 = pneg %p532
      $region42: #{tpu_custom_call.1} parent=5 // pred_check_branch
        %535 = sbr.rel (%p533) target = $region44
      $region43: #{tpu_custom_call.1} parent=5 // pred_region
        %s536 = ssub.s32 %s12, 2
        // Predicated region
        $region45: #{tpu_custom_call.1} parent=43 // pred_check
          %p537 = pneg %p109
        $region46: #{tpu_custom_call.1} parent=43 // pred_check_branch
          %539 = sbr.rel (%p537) target = $region48
        $region47: #{tpu_custom_call.1} parent=43 // pred_region
          %s540 = smul.u32 16, %s18
          %p541 = scmp.lt.s32.totalorder %s540, 63
          %s542 = scalar_select %p541, %s540, 63
          %s543 = smul.addr %s542, 4
          %s544 = scalar_lea.vmem %s3, %s543
        $region48: #{tpu_custom_call.1} parent=43 // pred_fallthru
          _
      $region44: #{tpu_custom_call.1} parent=5 // pred_fallthru
        _
    $region6: #{tpu_custom_call.1} parent=1 // loop_footer
      %s16 = sadd.s32 1, %s12
    $region7: #{tpu_custom_call.1} parent=1 // loop_footer_branch
      %11 = sbr.rel target = $region3
    $region8: #{tpu_custom_call.1} parent=1 // loop_exit
      _
    %545 = vsyncpa [#allocation3], 1
    %s546 = scalar_lea.sflag [#allocation3], 1
    %547 = vsyncpa %s546, 1

</llo_original>
